<compile_context>
chip_gen: v5e
topology: v5e:2x2
jax: 0.10.0
libtpu: 0.0.40
codegen_flags: <defaults>
</compile_context>

<pallas_src>
import functools

import jax
import jax.numpy as jnp
from jax.experimental import pallas as pl
from jax.experimental.pallas import tpu as pltpu


def _decoder_kernel(x_ref, w_ref, b_ref, o_ref):
    # x_ref: (TB, K) bf16   w_ref: (K, TN) bf16   b_ref: (1, TN) f32
    # o_ref: (TB, TN) f32
    z = jnp.dot(x_ref[...], w_ref[...], preferred_element_type=jnp.float32)
    z = z + b_ref[...]                      # broadcast bias over batch rows
    o_ref[...] = jax.nn.sigmoid(z).astype(o_ref.dtype)


def _pick_tile(dim, preferred):
    """Largest preferred tile evenly dividing `dim`, else the full extent
    (full-dim blocks satisfy the (8,128) BlockSpec rule via the full-array
    escape)."""
    for t in preferred:
        if dim % t == 0:
            return t
    return dim


@functools.partial(jax.jit, static_argnames=("compute_dtype",))
def decoder_forward(x, w_t, bias, compute_dtype=jnp.bfloat16):
    """Inference forward of Decoder.

    x:    [B, k_4]            float32
    w_t:  [k_4, num_question] float32   (nn.Linear weight PRE-transposed once,
                                         outside the per-call path)
    bias: [num_question]      float32
    returns [B, num_question] float32
    """
    B, K = x.shape
    K2, N = w_t.shape
    assert K == K2, "k_4 mismatch between input and weight"

    # Weight-bandwidth-bound layer: bf16 operands halve HBM bytes; accumulate
    # in f32 on the MXU, keep bias/sigmoid in f32.
    x_c = x.astype(compute_dtype)
    w_c = w_t.astype(compute_dtype)
    b2 = bias.reshape(1, N).astype(jnp.float32)

    # Lane-dense tiles: N tile is a multiple of 128 (>=512 preferred) so output
    # stores are unmasked; sizes kept small enough that double-buffered
    # (x + W + bias + out) tiles fit comfortably under v7x's scoped VMEM.
    tb = _pick_tile(B, (256, 128, 64, 32, 16, 8))
    tn = _pick_tile(N, (512, 256, 128))
    grid = (B // tb, N // tn)

    return pl.pallas_call(
        _decoder_kernel,
        out_shape=jax.ShapeDtypeStruct((B, N), jnp.float32),
        grid=grid,
        in_specs=[
            pl.BlockSpec((tb, K), lambda i, j: (i, 0)),
            pl.BlockSpec((K, tn), lambda i, j: (0, j)),
            pl.BlockSpec((1, tn), lambda i, j: (0, j)),
        ],
        out_specs=pl.BlockSpec((tb, tn), lambda i, j: (i, j)),
        compiler_params=pltpu.CompilerParams(
            # Independent tiles -> shard across v7x's two TensorCores;
            # no-op on single-TC v5e/v6e.
            dimension_semantics=("parallel", "parallel"),
        ),
    )(x_c, w_c, b2)


def _reference(x, w_t, bias, compute_dtype=jnp.bfloat16):
    xf = x.astype(compute_dtype).astype(jnp.float32)
    wf = w_t.astype(compute_dtype).astype(jnp.float32)
    return jax.nn.sigmoid(xf @ wf + bias)


def _run_case(key, B, K4, NQ):
    kx, kw, kb = jax.random.split(key, 3)
    bound = 1.0 / (K4 ** 0.5)
    # nn.Linear(k_4, num_question) parameter shapes.
    weight = jax.random.uniform(kw, (NQ, K4), jnp.float32, -bound, bound)
    bias = jax.random.uniform(kb, (NQ,), jnp.float32, -bound, bound)
    x = jax.random.normal(kx, (B, K4), jnp.float32)

    # Transpose hoisted out of the per-call path: done once at parameter prep.
    w_t = jnp.asarray(weight.T)  # [K, N]

    out = decoder_forward(x, w_t, bias)
    out = jax.block_until_ready(out)

    ref = _reference(x, w_t, bias)
    assert out.shape == (B, NQ)
    assert jnp.allclose(out, ref, atol=2e-5, rtol=2e-5), (
        f"mismatch vs reference for shape B={B}, K4={K4}, NQ={NQ}"
    )


if __name__ == "__main__":
    key = jax.random.PRNGKey(0)
    k1, k2 = jax.random.split(key)

    # Small shapes consistent with the module: batch=8, k_4=32, num_question=128.
    _run_case(k1, B=8, K4=32, NQ=128)
    # Slightly larger case exercising the multi-tile (B, N) grid.
    _run_case(k2, B=256, K4=32, NQ=1024)

    print("KERNEL_OK")
</pallas_src>

<mosaic_0001>
module attributes {stable_mosaic.version = 11 : i64} {
  func.func @_decoder_kernel(%arg0: i32, %arg1: i32, %arg2: memref<8x32xbf16, #tpu.memory_space<vmem>>, %arg3: memref<32x128xbf16, #tpu.memory_space<vmem>>, %arg4: memref<1x128xf32, #tpu.memory_space<vmem>>, %arg5: memref<8x128xf32, #tpu.memory_space<vmem>>) attributes {dimension_semantics = [#tpu.dimension_semantics<parallel>, #tpu.dimension_semantics<parallel>], iteration_bounds = array<i64: 1, 1>, scalar_prefetch = 0 : i64, scratch_operands = 0 : i64, tpu.core_type = #tpu.core_type<tc>, window_params = [{transform_indices = @transform_0, window_bounds = array<i64: 8, 32>}, {transform_indices = @transform_1, window_bounds = array<i64: 32, 128>}, {transform_indices = @transform_2, window_bounds = array<i64: 1, 128>}, {transform_indices = @transform_3, window_bounds = array<i64: 8, 128>}]} {
    %c0 = arith.constant 0 : index
    %c0_0 = arith.constant 0 : index
    %0 = vector.load %arg2[%c0, %c0_0] : memref<8x32xbf16, #tpu.memory_space<vmem>>, vector<8x32xbf16>
    %c0_1 = arith.constant 0 : index
    %c0_2 = arith.constant 0 : index
    %1 = vector.load %arg3[%c0_1, %c0_2] : memref<32x128xbf16, #tpu.memory_space<vmem>>, vector<32x128xbf16>
    %cst = arith.constant dense<0.000000e+00> : vector<8x128xf32>
    %2 = tpu.matmul %0, %1, %cst {dimension_numbers = #tpu.dot_dimension_numbers<[1], [0], [0], [1], [0, 0, 1, 1], [], []>} : vector<8x32xbf16>, vector<32x128xbf16>, vector<8x128xf32> -> vector<8x128xf32>
    %c0_3 = arith.constant 0 : index
    %c0_4 = arith.constant 0 : index
    %3 = vector.load %arg4[%c0_3, %c0_4] : memref<1x128xf32, #tpu.memory_space<vmem>>, vector<1x128xf32>
    %4 = vector.broadcast %3 : vector<1x128xf32> to vector<8x128xf32>
    %5 = arith.addf %2, %4 : vector<8x128xf32>
    %6 = arith.negf %5 : vector<8x128xf32>
    %7 = math.exp %6 : vector<8x128xf32>
    %cst_5 = arith.constant 1.000000e+00 : f32
    %8 = vector.broadcast %cst_5 : f32 to vector<8x128xf32>
    %9 = arith.addf %8, %7 : vector<8x128xf32>
    %10 = arith.divf %8, %9 : vector<8x128xf32>
    %c0_6 = arith.constant 0 : index
    %c0_7 = arith.constant 0 : index
    %11 = vector.load %arg5[%c0_6, %c0_7] : memref<8x128xf32, #tpu.memory_space<vmem>>, vector<8x128xf32>
    tpu.vector_store %arg5[%c0_6, %c0_7], %10 {strides = array<i32>} : memref<8x128xf32, #tpu.memory_space<vmem>>, vector<8x128xf32>,
    return
  }
  func.func @transform_0(%arg0: i32, %arg1: i32) -> (i32, i32) {
    %c0_i32 = arith.constant 0 : i32
    %c0_i32_0 = arith.constant 0 : i32
    return %arg0, %c0_i32 : i32, i32
  }
  func.func @transform_1(%arg0: i32, %arg1: i32) -> (i32, i32) {
    %c0_i32 = arith.constant 0 : i32
    %c0_i32_0 = arith.constant 0 : i32
    return %c0_i32, %arg1 : i32, i32
  }
  func.func @transform_2(%arg0: i32, %arg1: i32) -> (i32, i32) {
    %c0_i32 = arith.constant 0 : i32
    %c0_i32_0 = arith.constant 0 : i32
    return %c0_i32, %arg1 : i32, i32
  }
  func.func @transform_3(%arg0: i32, %arg1: i32) -> (i32, i32) {
    %c0_i32 = arith.constant 0 : i32
    return %arg0, %arg1 : i32, i32
  }
}

</mosaic_0001>

<llo_original>
// kernel: decoder_forward.1
$region0: #{decoder_forward.1}
  #allocation0 [shape = 'u32[]', space=smem, size = 0x4, offset = 0x4, fixed_abs, tag = 'smem constant byte address 0x4 - core index']
  #allocation1 [shape = 'u32[72,128]{1,0:T(1,128)}', space=vmem, size = 0x9000, scoped, tag = 'internal scratch']
  %s0 = inlined_call_operand.vmem [shape: bf16[8,32], index: 0, kind: input, shape index: {}]
  %s1 = inlined_call_operand.vmem [shape: bf16[32,128], index: 1, kind: input, shape index: {}]
  %s2 = inlined_call_operand.vmem [shape: f32[1,128], index: 2, kind: input, shape index: {}]
  %s3 = inlined_call_operand.hbm [shape: f32[8,128], index: 3, kind: output, shape index: {}]
  %s4 = sld [smem:[#allocation0]]
  $region22: #{decoder_forward.1} parent=0
    _
  %s6 = ssub.s32 1, %s4
  %s7 = scalar_select 0, %s6, %s4
  $region1: #{decoder_forward.1} parent=0
    #allocation2 [shape = 'u8[4096]{0}', space=vmem, size = 0x1000, scoped, tag = 'output window, operand 0, single buffered']
    #allocation3 [shape = 's32[1]{0}', space=sflag, size = 0x4, scoped, tag = 'scoped memory for decoder_forward.1']
    %8 = vsyncpa [#allocation3], 0
    // Predicated region
    $region2: #{decoder_forward.1} parent=1 // pred_check
      _
    $region3: #{decoder_forward.1} parent=1 // pred_check_branch
      %10 = sbr.rel (0) target = $region5
    $region4: #{decoder_forward.1} parent=1 // pred_region
      _
    $region5: #{decoder_forward.1} parent=1 // pred_fallthru
      _
    // Predicated region
    $region6: #{decoder_forward.1} parent=1 // pred_check
      _
    $region7: #{decoder_forward.1} parent=1 // pred_check_branch
      %12 = sbr.rel (0) target = $region9
    $region8: #{decoder_forward.1} parent=1 // pred_region
      _
    $region9: #{decoder_forward.1} parent=1 // pred_fallthru
      _
    // Predicated region
    $region10: #{decoder_forward.1} parent=1 // pred_check
      _
    $region11: #{decoder_forward.1} parent=1 // pred_check_branch
      %14 = sbr.rel (0) target = $region13
    $region12: #{decoder_forward.1} parent=1 // pred_region
      _
    $region13: #{decoder_forward.1} parent=1 // pred_fallthru
      _
    %v16 = vld [vmem:[%s0] sm:$0xf]
    %v17 = vld [vmem:[%s1] sm:$0xf]
    %v18 = vld [vmem:[%s1 + $0x4] sm:$0xf]
    %v19 = vld [vmem:[%s1 + $0x8] sm:$0xf]
    %v20 = vld [vmem:[%s1 + $0xc] sm:$0xf]
    %v21 = vld [vmem:[%s2] sm:$0x1]
    %v23 = vperm.slane %v21, 0
    %v29 = vunpack.c.l.b16 %v17
    %v30 = vunpack.c.l.b16 %v18
    %v31 = vunpack.c.l.b16 %v19
    %v32 = vunpack.c.l.b16 %v20
    %v33 = vpack.c.b16 %v30, %v29
    %v34 = vpack.c.b16 %v32, %v31
    %vm37 = vcmask 261120
    %v39 = vsel %vm37, %v16, 0
    %41 = vmatpush.bf16.msra.mxu0 0
    %42 = vmatpush.bf16.msra.mxu0 0
    %43 = vmatpush.bf16.msra.mxu0 0
    %44 = vmatpush.bf16.msra.mxu0 0
    %45 = vmatpush.bf16.msra.mxu0 0
    %46 = vmatpush.bf16.msra.mxu0 0
    %47 = vmatpush.bf16.msra.mxu0 %v34
    %48 = vmatpush.bf16.msra.mxu0 %v33
    %49 = vmatmul.bf16.gmra.mxu0 %v39
    %v50 = vpop.f32.mrf.mxu0
    %v51 = vadd.f32 %v23, %v50
    %v52 = vpop.f32.mrf.mxu0
    %53 = vdwg.mxu0
    %v54 = vxor.u32 %v51, 2147483648
    %v55 = vmul.f32 %v54, 1.442695
    %v56 = vpow.pop %v55
    %v57 = vadd.f32 %v56, 1.0
    %v58 = vrcp.pop %v57
    %v59 = vmul.f32 %v57, %v58
    %v60 = vsub.f32 1.0, %v59
    %v61 = vmul.f32 %v58, %v60
    %v62 = vadd.f32 %v58, %v61
    %vm63 = vweird.f32 %v57
    %vm64 = vweird.f32 %v58
    %vm65 = vmor %vm63, %vm64
    %v66 = vsel %vm65, %v58, %v62
    %v67 = vand.u32 2147483647, %v57
    %vm68 = vcmp.eq.f32.partialorder %v67, 8.507059e+37
    %v69 = vand.u32 %v57, 2147483648
    %v70 = vor.u32 1.1754944e-38, %v69
    %v71 = vsel %vm68, %v70, %v66
    %v72 = vmul.f32 1.0, %v71
    %73 = vst [vmem:[#allocation2] sm:$0xff] %v72
    // Predicated region
    $region14: #{decoder_forward.1} parent=1 // pred_check
      _
    $region15: #{decoder_forward.1} parent=1 // pred_check_branch
      %75 = sbr.rel (0) target = $region17
    $region16: #{decoder_forward.1} parent=1 // pred_region
      %77 = vsyncadd [#allocation3], 0
      %s79 = sshll.u32 [#allocation2], 4
      %s80 = int_to_ptr.vmem [resolvable:$true] %s79
      %s81 = sshll.u32 %s3, 4
      %s82 = int_to_ptr.hbm [resolvable:$true] %s81
      %84 = dma.vmem_to_hbm [thread:$0]  %s80, 128, %s82, [#allocation3]
    $region17: #{decoder_forward.1} parent=1 // pred_fallthru
      _
    // Predicated region
    $region18: #{decoder_forward.1} parent=1 // pred_check
      _
    $region19: #{decoder_forward.1} parent=1 // pred_check_branch
      %86 = sbr.rel (0) target = $region21
    $region20: #{decoder_forward.1} parent=1 // pred_region
      %88 = dma.done [#allocation3], 128
    $region21: #{decoder_forward.1} parent=1 // pred_fallthru
      _
    %89 = vsyncpa [#allocation3], 1

</llo_original>
